<compile_context>
chip_gen: v7x
topology: tpu7x:2x2x1
jax: 0.10.0
libtpu: 0.0.40
codegen_flags: <defaults>
</compile_context>

<pallas_src>
import jax
import jax.numpy as jnp
from jax.experimental import pallas as pl
from jax.experimental.pallas import tpu as pltpu


# Below this total HBM traffic (read + write bytes) a standalone custom call loses to
# a fused XLA concat; let XLA handle it.
_KERNEL_BYTES_THRESHOLD = 8 << 20      # ~8 MiB
# Per-row contiguous bytes at which strided HBM writes are already near roofline.
_DIRECT_CHUNK_BYTES = 2048             # e.g. D>=512 f32, D>=1024 bf16
# Target bytes for one staged output block (Pallas double-buffers -> ~2x this in VMEM).
_STAGE_BUF_BYTES = 2 << 20             # 2 MiB per buffer
_MAX_BLOCK_ROWS = 1024


# --------------------------------------------------------------------------- direct
def _concat_direct(embeds, B, D, dtype, total_bytes):
    """Direct HBM->HBM concat: 5 overlapping DMAs into column slices of out_ref."""

    def kernel(r0, r1, r2, r3, r4, out_ref, sem):
        srcs = (r0, r1, r2, r3, r4)
        copies = []
        # Start all 5 DMAs first so they overlap on the DMA engines.
        for k, src in enumerate(srcs):
            cp = pltpu.make_async_copy(src, out_ref.at[:, k * D:(k + 1) * D], sem.at[k])
            cp.start()
            copies.append(cp)
        for cp in copies:
            cp.wait()

    return pl.pallas_call(
        kernel,
        out_shape=jax.ShapeDtypeStruct((B, 5 * D), dtype),
        in_specs=[pl.BlockSpec(memory_space=pl.ANY)] * 5,
        out_specs=pl.BlockSpec(memory_space=pl.ANY),
        scratch_shapes=[pltpu.SemaphoreType.DMA((5,))],
        cost_estimate=pl.CostEstimate(
            flops=0, transcendentals=0, bytes_accessed=total_bytes),
    )(*embeds)


# --------------------------------------------------------------------------- staged
def _concat_staged(embeds, B, D, dtype, total_bytes, block_rows=None):
    """Row-tiled staged concat: HBM->VMEM DMAs assemble a (tB, 5*D) output block,
    Pallas's pipelined writeback emits one contiguous HBM write per block."""
    itemsize = jnp.dtype(dtype).itemsize
    row_bytes = 5 * D * itemsize

    if block_rows is None:
        tB = max(1, _STAGE_BUF_BYTES // row_bytes)
    else:
        tB = max(1, int(block_rows))
    tB = min(tB, _MAX_BLOCK_ROWS, B)
    if tB < B:
        # When actually tiling rows, keep the block's sublane dim a multiple of 8.
        tB = max(8, (tB // 8) * 8)
        tB = min(tB, B)

    num_blocks = pl.cdiv(B, tB)
    nb_full, rem = divmod(B, tB)

    def kernel(r0, r1, r2, r3, r4, out_ref, sem):
        i = pl.program_id(0)
        srcs = (r0, r1, r2, r3, r4)
        row0 = pl.multiple_of(i * tB, tB)

        def copy_rows(rows):
            copies = []
            # Inbound DMAs: HBM input rows -> column slices of the VMEM output block.
            for k, src in enumerate(srcs):
                cp = pltpu.make_async_copy(
                    src.at[pl.ds(row0, rows)],
                    out_ref.at[pl.ds(0, rows), k * D:(k + 1) * D],
                    sem.at[k])
                cp.start()
                copies.append(cp)
            for cp in copies:
                cp.wait()

        if rem == 0:
            copy_rows(tB)
        else:
            @pl.when(i < nb_full)
            def _full_block():
                copy_rows(tB)

            @pl.when(i == nb_full)
            def _partial_block():
                copy_rows(rem)

    return pl.pallas_call(
        kernel,
        out_shape=jax.ShapeDtypeStruct((B, 5 * D), dtype),
        grid=(num_blocks,),
        in_specs=[pl.BlockSpec(memory_space=pl.ANY)] * 5,
        out_specs=pl.BlockSpec((tB, 5 * D), lambda i: (i, 0)),
        scratch_shapes=[pltpu.SemaphoreType.DMA((5,))],
        compiler_params=pltpu.CompilerParams(
            dimension_semantics=("arbitrary",)),
        cost_estimate=pl.CostEstimate(
            flops=0, transcendentals=0, bytes_accessed=total_bytes),
    )(*embeds)


# --------------------------------------------------------------------------- wrapper
def self_attention_label(repu_embed, act_embed, cong_embed, reso_embed, div_embed,
                         *, use_kernel=None, force_path=None, block_rows=None):
    """Pallas equivalent of SelfAttentionLabel.forward: concat along axis=1.

    force_path: None (auto) | "concat" | "direct" | "staged"  (testing/override hook).
    """
    embeds = (repu_embed, act_embed, cong_embed, reso_embed, div_embed)
    B, D = repu_embed.shape
    dtype = repu_embed.dtype
    for e in embeds:
        assert e.shape == (B, D), "all embeddings must share the same (batch, dim) shape"
        assert e.dtype == dtype, "all embeddings must share the same dtype"

    itemsize = jnp.dtype(dtype).itemsize
    total_bytes = 2 * 5 * B * D * itemsize       # read 5*B*D + write 5*B*D
    chunk_bytes = D * itemsize                   # contiguous burst per row per input

    if force_path is None:
        if use_kernel is None:
            # Small problems (or fusible consumers) are better left to XLA's fused concat.
            use_kernel = total_bytes >= _KERNEL_BYTES_THRESHOLD
        if not use_kernel:
            path = "concat"
        elif chunk_bytes >= _DIRECT_CHUNK_BYTES or D % 128 != 0:
            # Large contiguous bursts: direct strided HBM writes are already near roofline.
            # Lane-unaligned D also uses the direct path (HBM->HBM DMA needs no alignment).
            path = "direct"
        else:
            path = "staged"
    else:
        path = force_path

    if path == "concat":
        return jnp.concatenate(embeds, axis=1)
    if path == "direct":
        return _concat_direct(embeds, B, D, dtype, total_bytes)
    return _concat_staged(embeds, B, D, dtype, total_bytes, block_rows)


if __name__ == "__main__":
    key = jax.random.PRNGKey(0)
    B, D = 16, 128
    keys = jax.random.split(key, 5)
    embeds = tuple(jax.random.normal(k, (B, D), dtype=jnp.float32) for k in keys)
    ref = jnp.concatenate(embeds, axis=1)

    # 1) Auto-dispatch: tiny problem -> jnp.concatenate fallback (XLA fuses it).
    out_auto = jax.block_until_ready(self_attention_label(*embeds))
    assert out_auto.shape == (B, 5 * D)
    assert jnp.array_equal(out_auto, ref), "auto path mismatch"

    # 2) Direct HBM->HBM 5-DMA kernel.
    out_direct = jax.block_until_ready(
        self_attention_label(*embeds, force_path="direct"))
    assert jnp.array_equal(out_direct, ref), "direct kernel mismatch"

    # 3) Staged kernel, single block (tB == B).
    out_staged = jax.block_until_ready(
        self_attention_label(*embeds, force_path="staged"))
    assert jnp.array_equal(out_staged, ref), "staged kernel mismatch"

    # 4) Staged kernel with row tiling and a partial last block (B=20, tB=8).
    B2 = 20
    keys2 = jax.random.split(jax.random.PRNGKey(1), 5)
    embeds2 = tuple(jax.random.normal(k, (B2, D), dtype=jnp.float32) for k in keys2)
    ref2 = jnp.concatenate(embeds2, axis=1)
    out_tiled = jax.block_until_ready(
        self_attention_label(*embeds2, force_path="staged", block_rows=8))
    assert out_tiled.shape == (B2, 5 * D)
    assert jnp.array_equal(out_tiled, ref2), "tiled staged kernel mismatch"

    print("KERNEL_OK")
</pallas_src>

<mosaic_0001>
module attributes {stable_mosaic.version = 11 : i64} {
  func.func @kernel(%arg0: memref<16x128xf32, #tpu.memory_space<any>>, %arg1: memref<16x128xf32, #tpu.memory_space<any>>, %arg2: memref<16x128xf32, #tpu.memory_space<any>>, %arg3: memref<16x128xf32, #tpu.memory_space<any>>, %arg4: memref<16x128xf32, #tpu.memory_space<any>>, %arg5: memref<16x640xf32, #tpu.memory_space<any>>, %arg6: memref<5x!tpu.dma_semaphore, #tpu.memory_space<semaphore_mem>>) attributes {dimension_semantics = [], scalar_prefetch = 0 : i64, scratch_operands = 1 : i64, tpu.core_type = #tpu.core_type<tc>} {
    %c0_i32 = arith.constant 0 : i32
    %c0_i32_0 = arith.constant 0 : i32
    %c0_i32_1 = arith.constant 0 : i32
    %0 = tpu.memref_slice %arg5[%c0_i32_0, %c0_i32_1] : memref<16x640xf32, #tpu.memory_space<any>> -> memref<16x128xf32, #tpu.memory_space<any>>
    %1 = tpu.memref_slice %arg6[%c0_i32] : memref<5x!tpu.dma_semaphore, #tpu.memory_space<semaphore_mem>> -> memref<1x!tpu.dma_semaphore, #tpu.memory_space<semaphore_mem>>
    %2 = tpu.memref_squeeze %1 : memref<1x!tpu.dma_semaphore, #tpu.memory_space<semaphore_mem>> -> memref<!tpu.dma_semaphore, #tpu.memory_space<semaphore_mem>>
    tpu.enqueue_dma source(%arg0 : memref<16x128xf32, #tpu.memory_space<any>>) target(%0 : memref<16x128xf32, #tpu.memory_space<any>>) target_semaphore(%2 : memref<!tpu.dma_semaphore, #tpu.memory_space<semaphore_mem>>)
    %c1_i32 = arith.constant 1 : i32
    %c0_i32_2 = arith.constant 0 : i32
    %c128_i32 = arith.constant 128 : i32
    %3 = tpu.memref_slice %arg5[%c0_i32_2, %c128_i32] : memref<16x640xf32, #tpu.memory_space<any>> -> memref<16x128xf32, #tpu.memory_space<any>>
    %4 = tpu.memref_slice %arg6[%c1_i32] : memref<5x!tpu.dma_semaphore, #tpu.memory_space<semaphore_mem>> -> memref<1x!tpu.dma_semaphore, #tpu.memory_space<semaphore_mem>>
    %5 = tpu.memref_squeeze %4 : memref<1x!tpu.dma_semaphore, #tpu.memory_space<semaphore_mem>> -> memref<!tpu.dma_semaphore, #tpu.memory_space<semaphore_mem>>
    tpu.enqueue_dma source(%arg1 : memref<16x128xf32, #tpu.memory_space<any>>) target(%3 : memref<16x128xf32, #tpu.memory_space<any>>) target_semaphore(%5 : memref<!tpu.dma_semaphore, #tpu.memory_space<semaphore_mem>>)
    %c2_i32 = arith.constant 2 : i32
    %c0_i32_3 = arith.constant 0 : i32
    %c256_i32 = arith.constant 256 : i32
    %6 = tpu.memref_slice %arg5[%c0_i32_3, %c256_i32] : memref<16x640xf32, #tpu.memory_space<any>> -> memref<16x128xf32, #tpu.memory_space<any>>
    %7 = tpu.memref_slice %arg6[%c2_i32] : memref<5x!tpu.dma_semaphore, #tpu.memory_space<semaphore_mem>> -> memref<1x!tpu.dma_semaphore, #tpu.memory_space<semaphore_mem>>
    %8 = tpu.memref_squeeze %7 : memref<1x!tpu.dma_semaphore, #tpu.memory_space<semaphore_mem>> -> memref<!tpu.dma_semaphore, #tpu.memory_space<semaphore_mem>>
    tpu.enqueue_dma source(%arg2 : memref<16x128xf32, #tpu.memory_space<any>>) target(%6 : memref<16x128xf32, #tpu.memory_space<any>>) target_semaphore(%8 : memref<!tpu.dma_semaphore, #tpu.memory_space<semaphore_mem>>)
    %c3_i32 = arith.constant 3 : i32
    %c0_i32_4 = arith.constant 0 : i32
    %c384_i32 = arith.constant 384 : i32
    %9 = tpu.memref_slice %arg5[%c0_i32_4, %c384_i32] : memref<16x640xf32, #tpu.memory_space<any>> -> memref<16x128xf32, #tpu.memory_space<any>>
    %10 = tpu.memref_slice %arg6[%c3_i32] : memref<5x!tpu.dma_semaphore, #tpu.memory_space<semaphore_mem>> -> memref<1x!tpu.dma_semaphore, #tpu.memory_space<semaphore_mem>>
    %11 = tpu.memref_squeeze %10 : memref<1x!tpu.dma_semaphore, #tpu.memory_space<semaphore_mem>> -> memref<!tpu.dma_semaphore, #tpu.memory_space<semaphore_mem>>
    tpu.enqueue_dma source(%arg3 : memref<16x128xf32, #tpu.memory_space<any>>) target(%9 : memref<16x128xf32, #tpu.memory_space<any>>) target_semaphore(%11 : memref<!tpu.dma_semaphore, #tpu.memory_space<semaphore_mem>>)
    %c4_i32 = arith.constant 4 : i32
    %c0_i32_5 = arith.constant 0 : i32
    %c512_i32 = arith.constant 512 : i32
    %12 = tpu.memref_slice %arg5[%c0_i32_5, %c512_i32] : memref<16x640xf32, #tpu.memory_space<any>> -> memref<16x128xf32, #tpu.memory_space<any>>
    %13 = tpu.memref_slice %arg6[%c4_i32] : memref<5x!tpu.dma_semaphore, #tpu.memory_space<semaphore_mem>> -> memref<1x!tpu.dma_semaphore, #tpu.memory_space<semaphore_mem>>
    %14 = tpu.memref_squeeze %13 : memref<1x!tpu.dma_semaphore, #tpu.memory_space<semaphore_mem>> -> memref<!tpu.dma_semaphore, #tpu.memory_space<semaphore_mem>>
    tpu.enqueue_dma source(%arg4 : memref<16x128xf32, #tpu.memory_space<any>>) target(%12 : memref<16x128xf32, #tpu.memory_space<any>>) target_semaphore(%14 : memref<!tpu.dma_semaphore, #tpu.memory_space<semaphore_mem>>)
    %c0_i32_6 = arith.constant 0 : i32
    %c0_i32_7 = arith.constant 0 : i32
    %c0_i32_8 = arith.constant 0 : i32
    %15 = tpu.memref_slice %arg5[%c0_i32_7, %c0_i32_8] : memref<16x640xf32, #tpu.memory_space<any>> -> memref<16x128xf32, #tpu.memory_space<any>>
    %16 = tpu.memref_slice %arg6[%c0_i32_6] : memref<5x!tpu.dma_semaphore, #tpu.memory_space<semaphore_mem>> -> memref<1x!tpu.dma_semaphore, #tpu.memory_space<semaphore_mem>>
    %17 = tpu.memref_squeeze %16 : memref<1x!tpu.dma_semaphore, #tpu.memory_space<semaphore_mem>> -> memref<!tpu.dma_semaphore, #tpu.memory_space<semaphore_mem>>
    tpu.wait_dma2 semaphore(%17 : memref<!tpu.dma_semaphore, #tpu.memory_space<semaphore_mem>>) src(%arg0 : memref<16x128xf32, #tpu.memory_space<any>>) dst(%15 : memref<16x128xf32, #tpu.memory_space<any>>)
    %c1_i32_9 = arith.constant 1 : i32
    %c0_i32_10 = arith.constant 0 : i32
    %c128_i32_11 = arith.constant 128 : i32
    %18 = tpu.memref_slice %arg5[%c0_i32_10, %c128_i32_11] : memref<16x640xf32, #tpu.memory_space<any>> -> memref<16x128xf32, #tpu.memory_space<any>>
    %19 = tpu.memref_slice %arg6[%c1_i32_9] : memref<5x!tpu.dma_semaphore, #tpu.memory_space<semaphore_mem>> -> memref<1x!tpu.dma_semaphore, #tpu.memory_space<semaphore_mem>>
    %20 = tpu.memref_squeeze %19 : memref<1x!tpu.dma_semaphore, #tpu.memory_space<semaphore_mem>> -> memref<!tpu.dma_semaphore, #tpu.memory_space<semaphore_mem>>
    tpu.wait_dma2 semaphore(%20 : memref<!tpu.dma_semaphore, #tpu.memory_space<semaphore_mem>>) src(%arg1 : memref<16x128xf32, #tpu.memory_space<any>>) dst(%18 : memref<16x128xf32, #tpu.memory_space<any>>)
    %c2_i32_12 = arith.constant 2 : i32
    %c0_i32_13 = arith.constant 0 : i32
    %c256_i32_14 = arith.constant 256 : i32
    %21 = tpu.memref_slice %arg5[%c0_i32_13, %c256_i32_14] : memref<16x640xf32, #tpu.memory_space<any>> -> memref<16x128xf32, #tpu.memory_space<any>>
    %22 = tpu.memref_slice %arg6[%c2_i32_12] : memref<5x!tpu.dma_semaphore, #tpu.memory_space<semaphore_mem>> -> memref<1x!tpu.dma_semaphore, #tpu.memory_space<semaphore_mem>>
    %23 = tpu.memref_squeeze %22 : memref<1x!tpu.dma_semaphore, #tpu.memory_space<semaphore_mem>> -> memref<!tpu.dma_semaphore, #tpu.memory_space<semaphore_mem>>
    tpu.wait_dma2 semaphore(%23 : memref<!tpu.dma_semaphore, #tpu.memory_space<semaphore_mem>>) src(%arg2 : memref<16x128xf32, #tpu.memory_space<any>>) dst(%21 : memref<16x128xf32, #tpu.memory_space<any>>)
    %c3_i32_15 = arith.constant 3 : i32
    %c0_i32_16 = arith.constant 0 : i32
    %c384_i32_17 = arith.constant 384 : i32
    %24 = tpu.memref_slice %arg5[%c0_i32_16, %c384_i32_17] : memref<16x640xf32, #tpu.memory_space<any>> -> memref<16x128xf32, #tpu.memory_space<any>>
    %25 = tpu.memref_slice %arg6[%c3_i32_15] : memref<5x!tpu.dma_semaphore, #tpu.memory_space<semaphore_mem>> -> memref<1x!tpu.dma_semaphore, #tpu.memory_space<semaphore_mem>>
    %26 = tpu.memref_squeeze %25 : memref<1x!tpu.dma_semaphore, #tpu.memory_space<semaphore_mem>> -> memref<!tpu.dma_semaphore, #tpu.memory_space<semaphore_mem>>
    tpu.wait_dma2 semaphore(%26 : memref<!tpu.dma_semaphore, #tpu.memory_space<semaphore_mem>>) src(%arg3 : memref<16x128xf32, #tpu.memory_space<any>>) dst(%24 : memref<16x128xf32, #tpu.memory_space<any>>)
    %c4_i32_18 = arith.constant 4 : i32
    %c0_i32_19 = arith.constant 0 : i32
    %c512_i32_20 = arith.constant 512 : i32
    %27 = tpu.memref_slice %arg5[%c0_i32_19, %c512_i32_20] : memref<16x640xf32, #tpu.memory_space<any>> -> memref<16x128xf32, #tpu.memory_space<any>>
    %28 = tpu.memref_slice %arg6[%c4_i32_18] : memref<5x!tpu.dma_semaphore, #tpu.memory_space<semaphore_mem>> -> memref<1x!tpu.dma_semaphore, #tpu.memory_space<semaphore_mem>>
    %29 = tpu.memref_squeeze %28 : memref<1x!tpu.dma_semaphore, #tpu.memory_space<semaphore_mem>> -> memref<!tpu.dma_semaphore, #tpu.memory_space<semaphore_mem>>
    tpu.wait_dma2 semaphore(%29 : memref<!tpu.dma_semaphore, #tpu.memory_space<semaphore_mem>>) src(%arg4 : memref<16x128xf32, #tpu.memory_space<any>>) dst(%27 : memref<16x128xf32, #tpu.memory_space<any>>)
    return
  }
}

</mosaic_0001>

<llo_original>
// kernel: tpu_custom_call.1
$region0: #{tpu_custom_call.1}
  #allocation0 [shape = 'u32[]', space=smem, size = 0x4, offset = 0x4, fixed_abs, tag = 'smem constant byte address 0x4 - core index']
  #allocation1 [shape = 'u32[144,128]{1,0:T(1,128)}', space=vmem, size = 0x12000, scoped, tag = 'internal scratch']
  #allocation2 [shape = 's32[5]{0}', space=sflag, size = 0x14, scoped, tag = 'scratch operand']
  #allocation3 [shape = 's32[]', space=sflag, size = 0x4, offset = 0, fixed_abs, tag = 'sflag constant byte address 0x0 - dummy sync flag']
  #allocation5 [shape = 's32[]', space=sflag, size = 0x4, offset = 0, fixed_abs, tag = 'sflag constant byte address 0x0 - dummy sync flag']
  #allocation7 [shape = 's32[]', space=sflag, size = 0x4, offset = 0, fixed_abs, tag = 'sflag constant byte address 0x0 - dummy sync flag']
  #allocation9 [shape = 's32[]', space=sflag, size = 0x4, offset = 0, fixed_abs, tag = 'sflag constant byte address 0x0 - dummy sync flag']
  #allocation11 [shape = 's32[]', space=sflag, size = 0x4, offset = 0, fixed_abs, tag = 'sflag constant byte address 0x0 - dummy sync flag']
  %s0 = inlined_call_operand.hbm [shape: f32[16,128], index: 0, kind: input, shape index: {}]
  %s1 = inlined_call_operand.hbm [shape: f32[16,128], index: 1, kind: input, shape index: {}]
  %s2 = inlined_call_operand.hbm [shape: f32[16,128], index: 2, kind: input, shape index: {}]
  %s3 = inlined_call_operand.hbm [shape: f32[16,128], index: 3, kind: input, shape index: {}]
  %s4 = inlined_call_operand.hbm [shape: f32[16,128], index: 4, kind: input, shape index: {}]
  %s5 = inlined_call_operand.hbm [shape: f32[16,640], index: 5, kind: output, shape index: {}]
  %s6 = sld [smem:[#allocation0]]
  $region2: #{tpu_custom_call.1} parent=0
    _
  %s8 = ssub.s32 1, %s6
  %s9 = scalar_select 0, %s8, %s6
  $region1: #{tpu_custom_call.1} parent=0
    #allocation4 [shape = 'u32[3]{0}', space=smem, size = 0xc, scoped, tag = 'DMA stride descriptor']
    #allocation6 [shape = 'u32[3]{0}', space=smem, size = 0xc, scoped, tag = 'DMA stride descriptor']
    #allocation8 [shape = 'u32[3]{0}', space=smem, size = 0xc, scoped, tag = 'DMA stride descriptor']
    #allocation10 [shape = 'u32[3]{0}', space=smem, size = 0xc, scoped, tag = 'DMA stride descriptor']
    #allocation12 [shape = 'u32[3]{0}', space=smem, size = 0xc, scoped, tag = 'DMA stride descriptor']
    %s11 = sshll.u32 1, 14
    %s12 = sxor.u32 4294967295, %s11
    %s15 = sshll.u32 3, 24
    %s16 = sxor.u32 4294967295, %s15
    %s17 = sand.u32 0, %s16
    %s19 = sor.u32 %s17, 0
    %22 = sst [smem:[#allocation4]] 128
    %s23 = scalar_lea.smem [#allocation4], 1
    %24 = sst [smem:[%s23]] 640
    %s25 = scalar_lea.smem [#allocation4], 2
    %26 = sst [smem:[%s25]] 8
    %28 = dma.general %s0, 256, %s5, [#allocation2], [#allocation3], [#allocation4], %s19, 0
    %s29 = scalar_lea.hbm %s5, 128
    %s30 = scalar_lea.sflag [#allocation2], 1
    %s32 = sshll.u32 1, 14
    %s33 = sxor.u32 4294967295, %s32
    %s36 = sshll.u32 3, 24
    %s37 = sxor.u32 4294967295, %s36
    %s38 = sand.u32 0, %s37
    %s40 = sor.u32 %s38, 0
    %43 = sst [smem:[#allocation6]] 128
    %s44 = scalar_lea.smem [#allocation6], 1
    %45 = sst [smem:[%s44]] 640
    %s46 = scalar_lea.smem [#allocation6], 2
    %47 = sst [smem:[%s46]] 8
    %49 = dma.general %s1, 256, %s29, %s30, [#allocation5], [#allocation6], %s40, 0
    %s50 = scalar_lea.hbm %s5, 256
    %s51 = scalar_lea.sflag [#allocation2], 2
    %s53 = sshll.u32 1, 14
    %s54 = sxor.u32 4294967295, %s53
    %s57 = sshll.u32 3, 24
    %s58 = sxor.u32 4294967295, %s57
    %s59 = sand.u32 0, %s58
    %s61 = sor.u32 %s59, 0
    %64 = sst [smem:[#allocation8]] 128
    %s65 = scalar_lea.smem [#allocation8], 1
    %66 = sst [smem:[%s65]] 640
    %s67 = scalar_lea.smem [#allocation8], 2
    %68 = sst [smem:[%s67]] 8
    %70 = dma.general %s2, 256, %s50, %s51, [#allocation7], [#allocation8], %s61, 0
    %s71 = scalar_lea.hbm %s5, 384
    %s72 = scalar_lea.sflag [#allocation2], 3
    %s74 = sshll.u32 1, 14
    %s75 = sxor.u32 4294967295, %s74
    %s78 = sshll.u32 3, 24
    %s79 = sxor.u32 4294967295, %s78
    %s80 = sand.u32 0, %s79
    %s82 = sor.u32 %s80, 0
    %85 = sst [smem:[#allocation10]] 128
    %s86 = scalar_lea.smem [#allocation10], 1
    %87 = sst [smem:[%s86]] 640
    %s88 = scalar_lea.smem [#allocation10], 2
    %89 = sst [smem:[%s88]] 8
    %91 = dma.general %s3, 256, %s71, %s72, [#allocation9], [#allocation10], %s82, 0
    %s92 = scalar_lea.hbm %s5, 512
    %s93 = scalar_lea.sflag [#allocation2], 4
    %s95 = sshll.u32 1, 14
    %s96 = sxor.u32 4294967295, %s95
    %s99 = sshll.u32 3, 24
    %s100 = sxor.u32 4294967295, %s99
    %s101 = sand.u32 0, %s100
    %s103 = sor.u32 %s101, 0
    %106 = sst [smem:[#allocation12]] 128
    %s107 = scalar_lea.smem [#allocation12], 1
    %108 = sst [smem:[%s107]] 640
    %s109 = scalar_lea.smem [#allocation12], 2
    %110 = sst [smem:[%s109]] 8
    %112 = dma.general %s4, 256, %s92, %s93, [#allocation11], [#allocation12], %s103, 0
    %s113 = smul.u32 8, 2
    %s114 = smul.u32 %s113, 1
    %s115 = sshll.u32 %s114, 4
    %116 = dma.done [#allocation2], %s115
    %s117 = sshll.u32 %s114, 4
    %118 = dma.done %s30, %s117
    %s119 = sshll.u32 %s114, 4
    %120 = dma.done %s51, %s119
    %s121 = sshll.u32 %s114, 4
    %122 = dma.done %s72, %s121
    %s123 = sshll.u32 %s114, 4
    %124 = dma.done %s93, %s123
  %125 = vsyncmov [#allocation2]
  %s126 = vpop.sfrf %125
  %p127 = scmp.eq.s32.totalorder %s126, 0
  %p128 = pneg %p127
  %130 = shalt.err (%p128)
  %s131 = scalar_lea.sflag [#allocation2], 1
  %132 = vsyncmov %s131
  %s133 = vpop.sfrf %132
  %p134 = scmp.eq.s32.totalorder %s133, 0
  %p135 = pneg %p134
  %137 = shalt.err (%p135)
  %s138 = scalar_lea.sflag [#allocation2], 2
  %139 = vsyncmov %s138
  %s140 = vpop.sfrf %139
  %p141 = scmp.eq.s32.totalorder %s140, 0
  %p142 = pneg %p141
  %144 = shalt.err (%p142)
  %s145 = scalar_lea.sflag [#allocation2], 3
  %146 = vsyncmov %s145
  %s147 = vpop.sfrf %146
  %p148 = scmp.eq.s32.totalorder %s147, 0
  %p149 = pneg %p148
  %151 = shalt.err (%p149)
  %s152 = scalar_lea.sflag [#allocation2], 4
  %153 = vsyncmov %s152
  %s154 = vpop.sfrf %153
  %p155 = scmp.eq.s32.totalorder %s154, 0
  %p156 = pneg %p155
  %158 = shalt.err (%p156)

</llo_original>
